<compile_context>
chip_gen: v7x
topology: tpu7x:2x2x1
jax: 0.10.0
libtpu: 0.0.40
codegen_flags: <defaults>
</compile_context>

<pallas_src>
import jax
import jax.numpy as jnp
from jax.experimental import pallas as pl
from jax.experimental.pallas import tpu as pltpu


def _round_up(a, b):
    return (a + b - 1) // b * b


def _tile_config():
    """(tm, tv, vmem_limit_bytes) per TPU generation."""
    kind = ""
    try:
        kind = jax.devices()[0].device_kind.lower()
    except Exception:
        pass
    if "v7" in kind:
        # 64 MiB VMEM per TC -> cap usable scoped VMEM at ~48 MiB.
        return 512, 256, 48 * 1024 * 1024
    if "v6" in kind:
        # 128 MiB VMEM, ~650 bf16-FLOP/byte knee -> grow the row tile.
        return 512, 256, 64 * 1024 * 1024
    # v5e and older / unknown: tm=256 already sits at the v5e roofline knee.
    return 256, 256, 32 * 1024 * 1024


# ----------------------------------------------------------------------------
# Kernels
# ----------------------------------------------------------------------------
def _lse_cache_kernel(x_ref, w_ref, b_ref, lse_ref, cache_ref, m_sc, s_sc):
    """Pass 1 (cached): logits tile + online-softmax stats -> lse, cached logits."""
    j = pl.program_id(1)

    @pl.when(j == 0)
    def _():
        m_sc[...] = jnp.full_like(m_sc, -jnp.inf)
        s_sc[...] = jnp.zeros_like(s_sc)

    logits = jnp.dot(x_ref[...].astype(w_ref.dtype), w_ref[...],
                     preferred_element_type=jnp.float32) + b_ref[...]
    cache_ref[...] = logits.astype(cache_ref.dtype)

    m_old = m_sc[...]
    m_new = jnp.maximum(m_old, jnp.max(logits, axis=-1, keepdims=True))
    s_sc[...] = (s_sc[...] * jnp.exp(m_old - m_new)
                 + jnp.sum(jnp.exp(logits - m_new), axis=-1, keepdims=True))
    m_sc[...] = m_new

    @pl.when(j == pl.num_programs(1) - 1)
    def _():
        lse_ref[...] = m_sc[...] + jnp.log(s_sc[...])


def _lse_kernel(x_ref, w_ref, b_ref, lse_ref, m_sc, s_sc):
    """Pass 1 (recompute path): per-row logsumexp only."""
    j = pl.program_id(1)

    @pl.when(j == 0)
    def _():
        m_sc[...] = jnp.full_like(m_sc, -jnp.inf)
        s_sc[...] = jnp.zeros_like(s_sc)

    logits = jnp.dot(x_ref[...].astype(w_ref.dtype), w_ref[...],
                     preferred_element_type=jnp.float32) + b_ref[...]

    m_old = m_sc[...]
    m_new = jnp.maximum(m_old, jnp.max(logits, axis=-1, keepdims=True))
    s_sc[...] = (s_sc[...] * jnp.exp(m_old - m_new)
                 + jnp.sum(jnp.exp(logits - m_new), axis=-1, keepdims=True))
    m_sc[...] = m_new

    @pl.when(j == pl.num_programs(1) - 1)
    def _():
        lse_ref[...] = m_sc[...] + jnp.log(s_sc[...])


def _sub_lse_kernel(cache_ref, lse_ref, o_ref):
    """Pass 2 (cached): elementwise logits - lse, written in place."""
    o_ref[...] = (cache_ref[...].astype(jnp.float32)
                  - lse_ref[...]).astype(o_ref.dtype)


def _logprob_kernel(x_ref, w_ref, b_ref, lse_ref, o_ref):
    """Pass 2 (recompute): recompute the logits tile and write log-probs."""
    logits = jnp.dot(x_ref[...].astype(w_ref.dtype), w_ref[...],
                     preferred_element_type=jnp.float32) + b_ref[...]
    o_ref[...] = (logits - lse_ref[...]).astype(o_ref.dtype)


# ----------------------------------------------------------------------------
# Forward (jit-traced; all tile sizes / flags are static)
# ----------------------------------------------------------------------------
def _generator_forward(x, w, b, *, vocab, tm, tv, vmem_limit,
                       out_dtype, cache_logits, cache_dtype):
    """x: [B,S,D]; w: [D,Vp] (pre-cast/padded); b: [1,Vp] f32."""
    B, S, D = x.shape
    N = B * S
    Vp = w.shape[1]

    row_align = 16  # safe sublane alignment for both f32 and bf16 row tiles
    tm_eff = min(tm, _round_up(N, row_align))
    Np = _round_up(N, tm_eff)

    x2 = x.reshape(N, D)
    if Np != N:
        x2 = jnp.pad(x2, ((0, Np - N), (0, 0)))

    nR, nV = Np // tm_eff, Vp // tv

    x_spec = pl.BlockSpec((tm_eff, D), lambda i, j: (i, 0))
    w_spec = pl.BlockSpec((D, tv), lambda i, j: (0, j))
    b_spec = pl.BlockSpec((1, tv), lambda i, j: (0, j))
    lse_spec = pl.BlockSpec((tm_eff, 1), lambda i, j: (i, 0))
    tile_spec = pl.BlockSpec((tm_eff, tv), lambda i, j: (i, j))

    cparams_red = pltpu.CompilerParams(
        dimension_semantics=("parallel", "arbitrary"),
        vmem_limit_bytes=vmem_limit)
    cparams_par = pltpu.CompilerParams(
        dimension_semantics=("parallel", "parallel"),
        vmem_limit_bytes=vmem_limit)

    if cache_logits:
        # ---- Pass 1: lse + cached logits ---------------------------------
        lse, cache = pl.pallas_call(
            _lse_cache_kernel,
            out_shape=(jax.ShapeDtypeStruct((Np, 1), jnp.float32),
                       jax.ShapeDtypeStruct((Np, Vp), cache_dtype)),
            grid_spec=pltpu.PrefetchScalarGridSpec(
                num_scalar_prefetch=0,
                grid=(nR, nV),
                in_specs=[x_spec, w_spec, b_spec],
                out_specs=[lse_spec, tile_spec],
                scratch_shapes=[pltpu.VMEM((tm_eff, 1), jnp.float32),
                                pltpu.VMEM((tm_eff, 1), jnp.float32)]),
            compiler_params=cparams_red,
        )(x2, w, b)

        # ---- Pass 2: elementwise subtract (in place when dtypes match) ---
        alias = ({0: 0}
                 if jnp.dtype(cache_dtype) == jnp.dtype(out_dtype) else {})
        out = pl.pallas_call(
            _sub_lse_kernel,
            out_shape=jax.ShapeDtypeStruct((Np, Vp), out_dtype),
            grid_spec=pltpu.PrefetchScalarGridSpec(
                num_scalar_prefetch=0,
                grid=(nR, nV),
                in_specs=[tile_spec, lse_spec],
                out_specs=tile_spec),
            compiler_params=cparams_par,
            input_output_aliases=alias,
        )(cache, lse)
    else:
        # ---- Pass 1: lse only --------------------------------------------
        lse = pl.pallas_call(
            _lse_kernel,
            out_shape=jax.ShapeDtypeStruct((Np, 1), jnp.float32),
            grid_spec=pltpu.PrefetchScalarGridSpec(
                num_scalar_prefetch=0,
                grid=(nR, nV),
                in_specs=[x_spec, w_spec, b_spec],
                out_specs=lse_spec,
                scratch_shapes=[pltpu.VMEM((tm_eff, 1), jnp.float32),
                                pltpu.VMEM((tm_eff, 1), jnp.float32)]),
            compiler_params=cparams_red,
        )(x2, w, b)

        # ---- Pass 2: recompute logits, write log-probs --------------------
        out = pl.pallas_call(
            _logprob_kernel,
            out_shape=jax.ShapeDtypeStruct((Np, Vp), out_dtype),
            grid_spec=pltpu.PrefetchScalarGridSpec(
                num_scalar_prefetch=0,
                grid=(nR, nV),
                in_specs=[x_spec, w_spec, b_spec, lse_spec],
                out_specs=tile_spec),
            compiler_params=cparams_par,
        )(x2, w, b, lse)

    if Np != N or Vp != vocab:
        out = out[:N, :vocab]
    return out.reshape(B, S, vocab)


# ----------------------------------------------------------------------------
# One-time parameter prep + jitted forward factory
# ----------------------------------------------------------------------------
def make_generator(weight, bias, *, param_dtype=jnp.bfloat16,
                   out_dtype=jnp.float32, cache_logits=True,
                   cache_dtype=jnp.float32, tm=None, tv=None):
    """weight: [V, D] (PyTorch nn.Linear layout); bias: [V].

    Returns fwd(x) computing log_softmax(x @ weight.T + bias, axis=-1).
    Weight transpose/cast/padding happens once, here — not per call.
    """
    tm_cfg, tv_cfg, vmem_limit = _tile_config()
    tm = tm_cfg if tm is None else tm
    tv = tv_cfg if tv is None else tv

    V, D = weight.shape
    tv_eff = min(tv, _round_up(V, 128))
    Vp = _round_up(V, tv_eff)

    # (V, D) torch layout -> lane-dense (D, Vp) in the MXU dtype; bias -> f32
    # row with -1e30 on padded vocab columns (exp() == 0 in the normalizer).
    w_t = jnp.asarray(weight).T.astype(param_dtype)
    b_row = jnp.asarray(bias).astype(jnp.float32).reshape(1, V)
    if Vp != V:
        w_t = jnp.pad(w_t, ((0, 0), (0, Vp - V)))
        b_row = jnp.pad(b_row, ((0, 0), (0, Vp - V)), constant_values=-1e30)

    @jax.jit
    def fwd(x, w, b):
        return _generator_forward(
            x, w, b, vocab=V, tm=tm, tv=tv_eff, vmem_limit=vmem_limit,
            out_dtype=out_dtype, cache_logits=cache_logits,
            cache_dtype=cache_dtype)

    return lambda x: fwd(x, w_t, b_row)


if __name__ == "__main__":
    # Small shapes consistent with the module's forward.
    B, S, D_MODEL, VOCAB = 2, 8, 32, 128

    key = jax.random.PRNGKey(0)
    kx, kw, kb = jax.random.split(key, 3)

    x = jax.random.normal(kx, (B, S, D_MODEL), dtype=jnp.float32)
    # PyTorch nn.Linear shapes: W [vocab, d_model], b [vocab]
    weight = jax.random.normal(kw, (VOCAB, D_MODEL), dtype=jnp.float32) * 0.02
    bias = jax.random.normal(kb, (VOCAB,), dtype=jnp.float32) * 0.02

    # Default: cached-logits path (pass 2 is an in-place elementwise subtract).
    gen = make_generator(weight, bias)
    out = jax.block_until_ready(gen(x))
    assert out.shape == (B, S, VOCAB)

    # Also exercise the recompute path (for training-scale N*V).
    gen_rc = make_generator(weight, bias, cache_logits=False)
    out_rc = jax.block_until_ready(gen_rc(x))
    assert out_rc.shape == (B, S, VOCAB)

    # Tight check against a reference using the same bf16-rounded MXU operands.
    xr = x.astype(jnp.bfloat16).astype(jnp.float32)
    wr = weight.astype(jnp.bfloat16).astype(jnp.float32)
    ref_bf16 = jax.nn.log_softmax(xr @ wr.T + bias, axis=-1)
    assert jnp.allclose(out, ref_bf16, atol=1e-4, rtol=1e-4), \
        "cached path mismatch vs bf16-consistent reference"
    assert jnp.allclose(out_rc, ref_bf16, atol=1e-4, rtol=1e-4), \
        "recompute path mismatch vs bf16-consistent reference"

    # Loose check against the full-f32 reference (bf16 matmul rounding only).
    ref_f32 = jax.nn.log_softmax(x @ weight.T + bias, axis=-1)
    assert jnp.allclose(out, ref_f32, atol=3e-2, rtol=0.0), \
        "mismatch vs f32 reference"

    print("KERNEL_OK")
</pallas_src>

<mosaic_0001>
module attributes {stable_mosaic.version = 11 : i64} {
  func.func @_sub_lse_kernel(%arg0: i32, %arg1: i32, %arg2: memref<16x128xf32, #tpu.memory_space<vmem>>, %arg3: memref<16x1xf32, #tpu.memory_space<vmem>>, %arg4: memref<16x128xf32, #tpu.memory_space<vmem>>) attributes {dimension_semantics = [#tpu.dimension_semantics<parallel>, #tpu.dimension_semantics<parallel>], iteration_bounds = array<i64: 1, 1>, scalar_prefetch = 0 : i64, scratch_operands = 0 : i64, tpu.core_type = #tpu.core_type<tc>, window_params = [{transform_indices = @transform_0, window_bounds = array<i64: 16, 128>}, {transform_indices = @transform_1, window_bounds = array<i64: 16, 1>}, {transform_indices = @transform_2, window_bounds = array<i64: 16, 128>}]} {
    %c0 = arith.constant 0 : index
    %c0_0 = arith.constant 0 : index
    %0 = vector.load %arg2[%c0, %c0_0] : memref<16x128xf32, #tpu.memory_space<vmem>>, vector<16x128xf32>
    %c0_1 = arith.constant 0 : index
    %c0_2 = arith.constant 0 : index
    %1 = vector.load %arg3[%c0_1, %c0_2] : memref<16x1xf32, #tpu.memory_space<vmem>>, vector<16x1xf32>
    %2 = vector.broadcast %1 : vector<16x1xf32> to vector<16x128xf32>
    %3 = arith.subf %0, %2 : vector<16x128xf32>
    %c0_3 = arith.constant 0 : index
    %c0_4 = arith.constant 0 : index
    %4 = vector.load %arg4[%c0_3, %c0_4] : memref<16x128xf32, #tpu.memory_space<vmem>>, vector<16x128xf32>
    tpu.vector_store %arg4[%c0_3, %c0_4], %3 {strides = array<i32>} : memref<16x128xf32, #tpu.memory_space<vmem>>, vector<16x128xf32>,
    return
  }
  func.func @transform_0(%arg0: i32, %arg1: i32) -> (i32, i32) {
    %c0_i32 = arith.constant 0 : i32
    return %arg0, %arg1 : i32, i32
  }
  func.func @transform_1(%arg0: i32, %arg1: i32) -> (i32, i32) {
    %c0_i32 = arith.constant 0 : i32
    %c0_i32_0 = arith.constant 0 : i32
    return %arg0, %c0_i32 : i32, i32
  }
  func.func @transform_2(%arg0: i32, %arg1: i32) -> (i32, i32) {
    %c0_i32 = arith.constant 0 : i32
    return %arg0, %arg1 : i32, i32
  }
}

module attributes {stable_mosaic.version = 11 : i64} {
  func.func @_lse_cache_kernel(%arg0: i32, %arg1: i32, %arg2: memref<16x32xf32, #tpu.memory_space<vmem>>, %arg3: memref<32x128xbf16, #tpu.memory_space<vmem>>, %arg4: memref<1x128xf32, #tpu.memory_space<vmem>>, %arg5: memref<16x1xf32, #tpu.memory_space<vmem>>, %arg6: memref<16x128xf32, #tpu.memory_space<vmem>>, %arg7: memref<16x1xf32, #tpu.memory_space<vmem>>, %arg8: memref<16x1xf32, #tpu.memory_space<vmem>>) attributes {dimension_semantics = [#tpu.dimension_semantics<parallel>, #tpu.dimension_semantics<arbitrary>], iteration_bounds = array<i64: 1, 1>, scalar_prefetch = 0 : i64, scratch_operands = 2 : i64, tpu.core_type = #tpu.core_type<tc>, window_params = [{transform_indices = @transform_0, window_bounds = array<i64: 16, 32>}, {transform_indices = @transform_1, window_bounds = array<i64: 32, 128>}, {transform_indices = @transform_2, window_bounds = array<i64: 1, 128>}, {transform_indices = @transform_3, window_bounds = array<i64: 16, 1>}, {transform_indices = @transform_4, window_bounds = array<i64: 16, 128>}]} {
    %c0_i32 = arith.constant 0 : i32
    %0 = arith.cmpi eq, %arg1, %c0_i32 : i32
    %1 = arith.extui %0 : i1 to i32
    %c0_i32_0 = arith.constant 0 : i32
    %2 = arith.cmpi ne, %1, %c0_i32_0 : i32
    scf.if %2 {
      %cst_20 = arith.constant 0xFF800000 : f32
      %30 = vector.broadcast %cst_20 : f32 to vector<16x1xf32>
      %c0_21 = arith.constant 0 : index
      %c0_22 = arith.constant 0 : index
      %31 = vector.load %arg7[%c0_21, %c0_22] : memref<16x1xf32, #tpu.memory_space<vmem>>, vector<16x1xf32>
      tpu.vector_store %arg7[%c0_21, %c0_22], %30 {strides = array<i32>} : memref<16x1xf32, #tpu.memory_space<vmem>>, vector<16x1xf32>,
      %cst_23 = arith.constant 0.000000e+00 : f32
      %32 = vector.broadcast %cst_23 : f32 to vector<16x1xf32>
      %c0_24 = arith.constant 0 : index
      %c0_25 = arith.constant 0 : index
      %33 = vector.load %arg8[%c0_24, %c0_25] : memref<16x1xf32, #tpu.memory_space<vmem>>, vector<16x1xf32>
      tpu.vector_store %arg8[%c0_24, %c0_25], %32 {strides = array<i32>} : memref<16x1xf32, #tpu.memory_space<vmem>>, vector<16x1xf32>,
    } else {
    }
    %c0 = arith.constant 0 : index
    %c0_1 = arith.constant 0 : index
    %3 = vector.load %arg2[%c0, %c0_1] : memref<16x32xf32, #tpu.memory_space<vmem>>, vector<16x32xf32>
    %4 = arith.truncf %3 : vector<16x32xf32> to vector<16x32xbf16>
    %c0_2 = arith.constant 0 : index
    %c0_3 = arith.constant 0 : index
    %5 = vector.load %arg3[%c0_2, %c0_3] : memref<32x128xbf16, #tpu.memory_space<vmem>>, vector<32x128xbf16>
    %cst = arith.constant dense<0.000000e+00> : vector<16x128xf32>
    %6 = tpu.matmul %4, %5, %cst {dimension_numbers = #tpu.dot_dimension_numbers<[1], [0], [0], [1], [0, 0, 1, 1], [], []>} : vector<16x32xbf16>, vector<32x128xbf16>, vector<16x128xf32> -> vector<16x128xf32>
    %c0_4 = arith.constant 0 : index
    %c0_5 = arith.constant 0 : index
    %7 = vector.load %arg4[%c0_4, %c0_5] : memref<1x128xf32, #tpu.memory_space<vmem>>, vector<1x128xf32>
    %8 = vector.broadcast %7 : vector<1x128xf32> to vector<16x128xf32>
    %9 = arith.addf %6, %8 : vector<16x128xf32>
    %c0_6 = arith.constant 0 : index
    %c0_7 = arith.constant 0 : index
    %10 = vector.load %arg6[%c0_6, %c0_7] : memref<16x128xf32, #tpu.memory_space<vmem>>, vector<16x128xf32>
    tpu.vector_store %arg6[%c0_6, %c0_7], %9 {strides = array<i32>} : memref<16x128xf32, #tpu.memory_space<vmem>>, vector<16x128xf32>,
    %c0_8 = arith.constant 0 : index
    %c0_9 = arith.constant 0 : index
    %11 = vector.load %arg7[%c0_8, %c0_9] : memref<16x1xf32, #tpu.memory_space<vmem>>, vector<16x1xf32>
    %cst_10 = arith.constant dense<0xFF800000> : vector<16xf32>
    %12 = vector.multi_reduction <maximumf>, %9, %cst_10 [1] : vector<16x128xf32> to vector<16xf32>
    %13 = vector.shape_cast %12 : vector<16xf32> to vector<16x1xf32>
    %14 = arith.maximumf %11, %13 : vector<16x1xf32>
    %c0_11 = arith.constant 0 : index
    %c0_12 = arith.constant 0 : index
    %15 = vector.load %arg8[%c0_11, %c0_12] : memref<16x1xf32, #tpu.memory_space<vmem>>, vector<16x1xf32>
    %16 = arith.subf %11, %14 : vector<16x1xf32>
    %17 = math.exp %16 : vector<16x1xf32>
    %18 = arith.mulf %15, %17 : vector<16x1xf32>
    %19 = vector.broadcast %14 : vector<16x1xf32> to vector<16x128xf32>
    %20 = arith.subf %9, %19 : vector<16x128xf32>
    %21 = math.exp %20 : vector<16x128xf32>
    %cst_13 = arith.constant dense<0.000000e+00> : vector<16xf32>
    %22 = vector.multi_reduction <add>, %21, %cst_13 [1] : vector<16x128xf32> to vector<16xf32>
    %23 = vector.shape_cast %22 : vector<16xf32> to vector<16x1xf32>
    %24 = arith.addf %18, %23 : vector<16x1xf32>
    %c0_14 = arith.constant 0 : index
    %c0_15 = arith.constant 0 : index
    %25 = vector.load %arg8[%c0_14, %c0_15] : memref<16x1xf32, #tpu.memory_space<vmem>>, vector<16x1xf32>
    tpu.vector_store %arg8[%c0_14, %c0_15], %24 {strides = array<i32>} : memref<16x1xf32, #tpu.memory_space<vmem>>, vector<16x1xf32>,
    %c0_16 = arith.constant 0 : index
    %c0_17 = arith.constant 0 : index
    %26 = vector.load %arg7[%c0_16, %c0_17] : memref<16x1xf32, #tpu.memory_space<vmem>>, vector<16x1xf32>
    tpu.vector_store %arg7[%c0_16, %c0_17], %14 {strides = array<i32>} : memref<16x1xf32, #tpu.memory_space<vmem>>, vector<16x1xf32>,
    %c0_i32_18 = arith.constant 0 : i32
    %27 = arith.cmpi eq, %arg1, %c0_i32_18 : i32
    %28 = arith.extui %27 : i1 to i32
    %c0_i32_19 = arith.constant 0 : i32
    %29 = arith.cmpi ne, %28, %c0_i32_19 : i32
    scf.if %29 {
      %c0_20 = arith.constant 0 : index
      %c0_21 = arith.constant 0 : index
      %30 = vector.load %arg7[%c0_20, %c0_21] : memref<16x1xf32, #tpu.memory_space<vmem>>, vector<16x1xf32>
      %c0_22 = arith.constant 0 : index
      %c0_23 = arith.constant 0 : index
      %31 = vector.load %arg8[%c0_22, %c0_23] : memref<16x1xf32, #tpu.memory_space<vmem>>, vector<16x1xf32>
      %32 = math.log %31 : vector<16x1xf32>
      %33 = arith.addf %30, %32 : vector<16x1xf32>
      %c0_24 = arith.constant 0 : index
      %c0_25 = arith.constant 0 : index
      %34 = vector.load %arg5[%c0_24, %c0_25] : memref<16x1xf32, #tpu.memory_space<vmem>>, vector<16x1xf32>
      tpu.vector_store %arg5[%c0_24, %c0_25], %33 {strides = array<i32>} : memref<16x1xf32, #tpu.memory_space<vmem>>, vector<16x1xf32>,
    } else {
    }
    return
  }
  func.func @transform_0(%arg0: i32, %arg1: i32) -> (i32, i32) {
    %c0_i32 = arith.constant 0 : i32
    %c0_i32_0 = arith.constant 0 : i32
    return %arg0, %c0_i32 : i32, i32
  }
  func.func @transform_1(%arg0: i32, %arg1: i32) -> (i32, i32) {
    %c0_i32 = arith.constant 0 : i32
    %c0_i32_0 = arith.constant 0 : i32
    return %c0_i32, %arg1 : i32, i32
  }
  func.func @transform_2(%arg0: i32, %arg1: i32) -> (i32, i32) {
    %c0_i32 = arith.constant 0 : i32
    %c0_i32_0 = arith.constant 0 : i32
    return %c0_i32, %arg1 : i32, i32
  }
  func.func @transform_3(%arg0: i32, %arg1: i32) -> (i32, i32) {
    %c0_i32 = arith.constant 0 : i32
    %c0_i32_0 = arith.constant 0 : i32
    return %arg0, %c0_i32 : i32, i32
  }
  func.func @transform_4(%arg0: i32, %arg1: i32) -> (i32, i32) {
    %c0_i32 = arith.constant 0 : i32
    return %arg0, %arg1 : i32, i32
  }
}

</mosaic_0001>

<llo_original>
// kernel: fwd.3
$region0: #{fwd.3}
  #allocation0 [shape = 'u32[]', space=smem, size = 0x4, offset = 0x4, fixed_abs, tag = 'smem constant byte address 0x4 - core index']
  #allocation1 [shape = 'u32[144,128]{1,0:T(1,128)}', space=vmem, size = 0x12000, scoped, tag = 'internal scratch']
  %s0 = inlined_call_operand.vmem [shape: f32[16,128], index: 0, kind: input, shape index: {}, may-alias: {0,2}]
  %s1 = inlined_call_operand.vmem [shape: f32[16,1], index: 1, kind: input, shape index: {}]
  %s2 = inlined_call_operand.vmem [shape: f32[16,128], index: 2, kind: output, shape index: {}, may-alias: {0,2}]
  %s3 = sld [smem:[#allocation0]]
  $region18: #{fwd.3} parent=0
    _
  %s5 = ssub.s32 1, %s3
  %s6 = scalar_select 0, %s5, %s3
  // Predicated region
  $region2: #{fwd.3} parent=0 // pred_check
    _
  $region3: #{fwd.3} parent=0 // pred_check_branch
    %8 = sbr.rel (0) target = $region5
  $region4: #{fwd.3} parent=0 // pred_region
    _
  $region5: #{fwd.3} parent=0 // pred_fallthru
    _
  // Predicated region
  $region6: #{fwd.3} parent=0 // pred_check
    _
  $region7: #{fwd.3} parent=0 // pred_check_branch
    %10 = sbr.rel (0) target = $region9
  $region8: #{fwd.3} parent=0 // pred_region
    _
  $region9: #{fwd.3} parent=0 // pred_fallthru
    _
  %v11 = vld [vmem:[%s0] sm:$0xff]
  %v12 = vld [vmem:[%s0 + $0x8] sm:$0xff]
  %v13 = vld [vmem:[%s1] sm:$0xff]
  %v14 = vld [vmem:[%s1 + $0x8] sm:$0xff]
  %16 = vset.pattern.permute.xlu0 0
  %17 = vperm.xlu0 %16, %v13
  %v18 = vpop.permute.xlu0 %17
  %21 = vset.pattern.permute.xlu0 0
  %22 = vperm.xlu0 %21, %v14
  %v23 = vpop.permute.xlu0 %22
  %v25 = vsub.f32 %v11, %v18
  %v26 = vsub.f32 %v12, %v23
  %27 = vst [vmem:[%s2] sm:$0xff] %v25
  %28 = vst [vmem:[%s2 + $0x8] sm:$0xff] %v26
  // Predicated region
  $region10: #{fwd.3} parent=0 // pred_check
    _
  $region11: #{fwd.3} parent=0 // pred_check_branch
    %30 = sbr.rel (0) target = $region13
  $region12: #{fwd.3} parent=0 // pred_region
    _
  $region13: #{fwd.3} parent=0 // pred_fallthru
    _
  // Predicated region
  $region14: #{fwd.3} parent=0 // pred_check
    _
  $region15: #{fwd.3} parent=0 // pred_check_branch
    %32 = sbr.rel (0) target = $region17
  $region16: #{fwd.3} parent=0 // pred_region
    _
  $region17: #{fwd.3} parent=0 // pred_fallthru
    _

// kernel: fwd.2
$region0: #{fwd.2}
  #allocation0 [shape = 'u32[]', space=smem, size = 0x4, offset = 0x4, fixed_abs, tag = 'smem constant byte address 0x4 - core index']
  #allocation1 [shape = 'u32[144,128]{1,0:T(1,128)}', space=vmem, size = 0x12000, scoped, tag = 'internal scratch']
  #allocation2 [shape = 'f32[16,1]{1,0:T(8,128)}', space=vmem, size = 0x2000, scoped, tag = 'scratch operand']
  #allocation3 [shape = 'f32[16,1]{1,0:T(8,128)}', space=vmem, size = 0x2000, scoped, tag = 'scratch operand']
  %s0 = inlined_call_operand.hbm [shape: f32[16,32], index: 0, kind: input, shape index: {}]
  %s1 = inlined_call_operand.hbm [shape: bf16[32,128], index: 1, kind: input, shape index: {}]
  %s2 = inlined_call_operand.vmem [shape: f32[1,128], index: 2, kind: input, shape index: {}]
  %s3 = inlined_call_operand.vmem [shape: f32[16,1], index: 3, kind: output, shape index: {0}]
  %s4 = inlined_call_operand.vmem [shape: f32[16,128], index: 4, kind: output, shape index: {1}]
  %5 = xla_tuple %s3, %s4
  %s6 = sld [smem:[#allocation0]]
  $region46: #{fwd.2} parent=0
    _
  %s8 = ssub.s32 1, %s6
  %s9 = scalar_select 0, %s8, %s6
  $region1: #{fwd.2} parent=0
    #allocation4 [shape = 'u8[8192]{0}', space=vmem, size = 0x2000, scoped, tag = 'input window, operand 0, single buffered']
    #allocation5 [shape = 's32[1]{0}', space=sflag, size = 0x4, scoped, tag = 'scoped memory for fwd.2']
    #allocation6 [shape = 'u8[8192]{0}', space=vmem, size = 0x2000, scoped, tag = 'input window, operand 1, single buffered']
    #allocation7 [shape = 's32[1]{0}', space=sflag, size = 0x4, scoped, tag = 'scoped memory for fwd.2']
    %10 = vsyncpa [#allocation5], 0
    %11 = vsyncpa [#allocation7], 0
    // Predicated region
    $region2: #{fwd.2} parent=1 // pred_check
      _
    $region3: #{fwd.2} parent=1 // pred_check_branch
      %13 = sbr.rel (0) target = $region5
    $region4: #{fwd.2} parent=1 // pred_region
      %s15 = ssub.s32 256, 256
      %16 = vsyncadd [#allocation5], %s15
      %s17 = sshll.u32 [#allocation4], 4
      %s18 = int_to_ptr.vmem [resolvable:$true] %s17
      %23 = dma.hbm_to_vmem [thread:$0]  %s0, 256, %s18, [#allocation5], 128, 128, 8
    $region5: #{fwd.2} parent=1 // pred_fallthru
      _
    // Predicated region
    $region6: #{fwd.2} parent=1 // pred_check
      _
    $region7: #{fwd.2} parent=1 // pred_check_branch
      %25 = sbr.rel (0) target = $region9
    $region8: #{fwd.2} parent=1 // pred_region
      %s27 = ssub.s32 256, 256
      %28 = vsyncadd [#allocation7], %s27
      %s29 = sshll.u32 [#allocation6], 4
      %s30 = int_to_ptr.vmem [resolvable:$true] %s29
      %35 = dma.hbm_to_vmem [thread:$0]  %s1, 256, %s30, [#allocation7], 64, 64, 4
    $region9: #{fwd.2} parent=1 // pred_fallthru
      _
    // Predicated region
    $region10: #{fwd.2} parent=1 // pred_check
      _
    $region11: #{fwd.2} parent=1 // pred_check_branch
      %37 = sbr.rel (0) target = $region13
    $region12: #{fwd.2} parent=1 // pred_region
      _
    $region13: #{fwd.2} parent=1 // pred_fallthru
      _
    // Predicated region
    $region14: #{fwd.2} parent=1 // pred_check
      _
    $region15: #{fwd.2} parent=1 // pred_check_branch
      %39 = sbr.rel (0) target = $region17
    $region16: #{fwd.2} parent=1 // pred_region
      %40 = dma.done [#allocation5], 256
    $region17: #{fwd.2} parent=1 // pred_fallthru
      _
    // Predicated region
    $region18: #{fwd.2} parent=1 // pred_check
      _
    $region19: #{fwd.2} parent=1 // pred_check_branch
      %42 = sbr.rel (0) target = $region21
    $region20: #{fwd.2} parent=1 // pred_region
      %43 = dma.done [#allocation7], 256
    $region21: #{fwd.2} parent=1 // pred_fallthru
      _
    %p45 = scmp.eq.s32.totalorder 0, 0
    // Predicated region
    $region22: #{fwd.2} parent=1 // pred_check
      %p46 = pneg %p45
    $region23: #{fwd.2} parent=1 // pred_check_branch
      %48 = sbr.rel (%p46) target = $region25
    $region24: #{fwd.2} parent=1 // pred_region
      %vm49 = vcmask 7168
      %50 = vst.msk [vmem:[#allocation2] sm:$0xff] %vm49, -inf
      %51 = vst.msk [vmem:[#allocation2 + $0x8] sm:$0xff] %vm49, -inf
      %52 = vst.msk [vmem:[#allocation3] sm:$0xff] %vm49, 0.0
      %53 = vst.msk [vmem:[#allocation3 + $0x8] sm:$0xff] %vm49, 0.0
    $region25: #{fwd.2} parent=1 // pred_fallthru
      _
    %v54 = vld [vmem:[#allocation4] sm:$0xff]
    %v55 = vld [vmem:[#allocation4 + $0x8] sm:$0xff]
    %v56 = vpack.c.bf16 %v55, %v54
    %v57 = vld [vmem:[#allocation6] sm:$0xf]
    %v58 = vld [vmem:[#allocation6 + $0x4] sm:$0xf]
    %v59 = vld [vmem:[#allocation6 + $0x8] sm:$0xf]
    %v60 = vld [vmem:[#allocation6 + $0xc] sm:$0xf]
    %v61 = vld [vmem:[%s2] sm:$0x1]
    %v63 = vlaneseq
    %v64 = vshrl.u32 %v63, 7
    %v65 = vsub.s32 0, %v64
    %v66 = vrot.slane %v61, %v65
    %v72 = vunpack.c.l.b16 %v57
    %v73 = vunpack.c.l.b16 %v58
    %v74 = vunpack.c.l.b16 %v59
    %v75 = vunpack.c.l.b16 %v60
    %v76 = vpack.c.b16 %v73, %v72
    %v77 = vpack.c.b16 %v75, %v74
    %vm80 = vcmask 261120
    %v82 = vsel %vm80, %v56, 0
    %84 = vmatprep.subr.bf16.mxu0 0
    %85 = vmatpush1.bf16.msra.mxu0 %v76
    %86 = vmatprep.subr.bf16.mxu0 0
    %87 = vmatpush1.bf16.msra.mxu0 %v77
    %88 = vmatprep.subr.bf16.mxu0 0
    %89 = vmatpush1.bf16.msra.mxu0 0
    %90 = vmatprep.subr.bf16.mxu0 0
    %91 = vmatpush1.bf16.msra.mxu0 0
    %92 = vmatprep.subr.bf16.mxu0 0
    %93 = vmatpush1.bf16.msra.mxu0 0
    %94 = vmatprep.subr.bf16.mxu0 0
    %95 = vmatpush1.bf16.msra.mxu0 0
    %96 = vmatprep.subr.bf16.mxu0 0
    %97 = vmatpush1.bf16.msra.mxu0 0
    %98 = vmatprep.subr.bf16.mxu0 0
    %99 = vmatpush1.bf16.msra.mxu0 0
    %100 = vmatprep.subr.bf16.mxu0 0
    %101 = vmatpush1.bf16.msra.mxu0 0
    %102 = vmatprep.subr.bf16.mxu0 0
    %103 = vmatpush1.bf16.msra.mxu0 0
    %104 = vmatprep.subr.bf16.mxu0 0
    %105 = vmatpush1.bf16.msra.mxu0 0
    %106 = vmatprep.subr.bf16.mxu0 0
    %107 = vmatpush1.bf16.msra.mxu0 0
    %108 = vmatprep.subr.bf16.mxu0 0
    %109 = vmatpush1.bf16.msra.mxu0 0
    %110 = vmatprep.subr.bf16.mxu0 0
    %111 = vmatpush1.bf16.msra.mxu0 0
    %112 = vmatprep.subr.bf16.mxu0 0
    %113 = vmatpush1.bf16.msra.mxu0 0
    %114 = vmatprep.subr.bf16.mxu0 0
    %115 = vmatpush1.bf16.msra.mxu0 0
    %116 = vmatprep.mubr.bf16.mxu0 0
    %117 = vmatmul.mubr.bf16.gmra.mrb[0].mxu0 %v82
    %v118 = vpop.f32.mrb[0].mxu0
    %v119 = vadd.f32 %v66, %v118
    %v120 = vpop.f32.mrb[0].mxu0
    %v121 = vpop.f32.mrb[0].mxu0
    %v122 = vadd.f32 %v66, %v121
    %v123 = vpop.f32.mrb[0].mxu0
    %124 = vdwg.mxu0
    %125 = vst [vmem:[%s4] sm:$0xff] %v119
    %126 = vst [vmem:[%s4 + $0x8] sm:$0xff] %v122
    %v127 = vld [vmem:[#allocation2] sm:$0xff]
    %v128 = vld [vmem:[#allocation2 + $0x8] sm:$0xff]
    %129 = vmax.xlane.f32.xlu0 %v119
    %v130 = vpop.xlane.xlu0 %129
    %131 = vmax.xlane.f32.xlu0 %v122
    %v132 = vpop.xlane.xlu0 %131
    %v133 = vmax.f32 %v127, %v130
    %v134 = vmax.f32 %v128, %v132
    %v135 = vld [vmem:[#allocation3] sm:$0xff]
    %v136 = vld [vmem:[#allocation3 + $0x8] sm:$0xff]
    %v137 = vsub.f32 %v127, %v133
    %v138 = vsub.f32 %v128, %v134
    %v139 = vmul.f32 %v137, 1.442695
    %v140 = vpow.pop %v139
    %v141 = vmul.f32 %v138, 1.442695
    %v142 = vpow.pop %v141
    %v143 = vmul.f32 %v135, %v140
    %v144 = vmul.f32 %v136, %v142
    %146 = vset.pattern.permute.xlu0 0
    %147 = vperm.xlu0 %146, %v133
    %v148 = vpop.permute.xlu0 %147
    %151 = vset.pattern.permute.xlu0 0
    %152 = vperm.xlu0 %151, %v134
    %v153 = vpop.permute.xlu0 %152
    %v155 = vsub.f32 %v119, %v148
    %v156 = vsub.f32 %v122, %v153
    %v157 = vmul.f32 %v155, 1.442695
    %v158 = vpow.pop %v157
    %v159 = vmul.f32 %v156, 1.442695
    %v160 = vpow.pop %v159
    %161 = vadd.xlane.f32.xlu0 %v158
    %v162 = vpop.xlane.xlu0 %161
    %163 = vadd.xlane.f32.xlu0 %v160
    %v164 = vpop.xlane.xlu0 %163
    %v165 = vadd.f32 %v143, %v162
    %v166 = vadd.f32 %v144, %v164
    %vm167 = vcmask 7168
    %168 = vst.msk [vmem:[#allocation3] sm:$0xff] %vm167, %v165
    %169 = vst.msk [vmem:[#allocation3 + $0x8] sm:$0xff] %vm167, %v166
    %170 = vst.msk [vmem:[#allocation2] sm:$0xff] %vm167, %v133
    %171 = vst.msk [vmem:[#allocation2 + $0x8] sm:$0xff] %vm167, %v134
    // Predicated region
    $region26: #{fwd.2} parent=1 // pred_check
      %p172 = pneg %p45
    $region27: #{fwd.2} parent=1 // pred_check_branch
      %174 = sbr.rel (%p172) target = $region29
    $region28: #{fwd.2} parent=1 // pred_region
      %v175 = vld [vmem:[#allocation2] sm:$0xff]
      %v176 = vld [vmem:[#allocation2 + $0x8] sm:$0xff]
      %v177 = vld [vmem:[#allocation3] sm:$0xff]
      %v178 = vld [vmem:[#allocation3 + $0x8] sm:$0xff]
      %v179 = vlog2.pop %v177
      %v180 = vmul.f32 %v179, 0.6931472
      %v181 = vlog2.pop %v178
      %v182 = vmul.f32 %v181, 0.6931472
      %v183 = vadd.f32 %v175, %v180
      %v184 = vadd.f32 %v176, %v182
      %185 = vst.msk [vmem:[%s3] sm:$0xff] %vm167, %v183
      %186 = vst.msk [vmem:[%s3 + $0x8] sm:$0xff] %vm167, %v184
    $region29: #{fwd.2} parent=1 // pred_fallthru
      _
    // Predicated region
    $region30: #{fwd.2} parent=1 // pred_check
      _
    $region31: #{fwd.2} parent=1 // pred_check_branch
      %188 = sbr.rel (0) target = $region33
    $region32: #{fwd.2} parent=1 // pred_region
      _
    $region33: #{fwd.2} parent=1 // pred_fallthru
      _
    // Predicated region
    $region34: #{fwd.2} parent=1 // pred_check
      _
    $region35: #{fwd.2} parent=1 // pred_check_branch
      %190 = sbr.rel (0) target = $region37
    $region36: #{fwd.2} parent=1 // pred_region
      _
    $region37: #{fwd.2} parent=1 // pred_fallthru
      _
    // Predicated region
    $region38: #{fwd.2} parent=1 // pred_check
      _
    $region39: #{fwd.2} parent=1 // pred_check_branch
      %192 = sbr.rel (0) target = $region41
    $region40: #{fwd.2} parent=1 // pred_region
      _
    $region41: #{fwd.2} parent=1 // pred_fallthru
      _
    // Predicated region
    $region42: #{fwd.2} parent=1 // pred_check
      _
    $region43: #{fwd.2} parent=1 // pred_check_branch
      %194 = sbr.rel (0) target = $region45
    $region44: #{fwd.2} parent=1 // pred_region
      _
    $region45: #{fwd.2} parent=1 // pred_fallthru
      _
    %195 = vsyncpa [#allocation5], 1
    %196 = vsyncpa [#allocation7], 1

</llo_original>
